<compile_context>
chip_gen: v7x
topology: tpu7x:2x2x1
jax: 0.10.0
libtpu: 0.0.40
codegen_flags: <defaults>
</compile_context>

<pallas_src>
import jax
import jax.numpy as jnp
from jax import lax
from jax.experimental import pallas as pl
from jax.experimental.pallas import tpu as pltpu


def seasonal_kernel(x_ref, g_ref, d_ref, o_ref):
    k = pl.program_id(1)

    @pl.when(k == 0)
    def _():
        o_ref[...] = jnp.zeros_like(o_ref)

    x = x_ref[...]                 # (tile_b, N)   compute dtype (bf16 default)
    g = g_ref[...]                 # (tile_k, N)   compute dtype
    d = d_ref[pl.ds(k, 1), :]      # (1, tile_k)   f32 learned diagonal slice

    # Stage 1: u = x @ G_tile^T -> (tile_b, tile_k). Transposed-operand
    # contraction handled natively by the MXU (no XLU transpose copy).
    dims = (((1,), (1,)), ((), ()))
    u = lax.dot_general(x, g, dims, preferred_element_type=jnp.float32)

    # Learned diagonal: lane-dense row-vector scale on the VPU, back to MXU dtype.
    u = (u * d).astype(g.dtype)

    # Stage 2: project back to the time domain; accumulate directly into the
    # resident f32 output block (its index_map ignores k -> it is the accumulator).
    o_ref[...] += jnp.dot(u, g, preferred_element_type=jnp.float32)

    @pl.when(k == pl.num_programs(1) - 1)
    def _():
        o_ref[...] = jnp.tanh(o_ref[...])


def _round_up(x, m):
    return ((x + m - 1) // m) * m


def _tpu_vitals():
    """Best-effort (vmem_capacity_bytes, tensorcores_per_chip); conservative fallbacks."""
    vmem_capacity = 64 * 1024 * 1024   # v7x per-TC VMEM = safe lower bound
    num_cores = 1
    try:
        cap = getattr(pltpu.get_tpu_info(), "vmem_capacity_bytes", None)
        if cap:
            vmem_capacity = int(cap)
    except Exception:
        pass
    try:
        kind = jax.devices()[0].device_kind.lower()
    except Exception:
        kind = ""
    if "v7" in kind:
        num_cores = 2                                   # feed both TensorCores
        vmem_capacity = min(vmem_capacity, 64 * 1024 * 1024)
    return vmem_capacity, num_cores


def _choose_tile_b(batch, num_cores, sublane, cap=512):
    """Largest batch tile (<= cap, sublane-aligned) giving >= num_cores near-even tiles."""
    if batch <= sublane:
        return batch                                    # tiny batch: one unpadded block
    n_tiles = max(num_cores, -(-batch // cap))
    return _round_up(-(-batch // n_tiles), sublane)


def seasonal_forward(x, fr, fi, diagonal, *, compute_dtype=jnp.bfloat16, tile_k=None):
    """y = tanh(x @ real(F^H diag(d) F)) without building the circulant matrix.

    bf16 MXU operands by default (f32 accumulation, f32 diagonal/tanh); pass
    compute_dtype=jnp.float32 for tighter numerics at ~2x the HBM/MXU cost.
    """
    B, N = x.shape
    assert fr.shape == (N, N) and fi.shape == (N, N) and diagonal.shape == (N,)
    K = 2 * N

    # Stacked real/imag basis and duplicated diagonal (see header).
    g = jnp.concatenate([fr, fi], axis=0).astype(compute_dtype)        # (2N, N)
    d2 = jnp.concatenate([diagonal, diagonal]).astype(jnp.float32)     # (2N,)
    x_c = x.astype(compute_dtype)

    itemsize = jnp.dtype(compute_dtype).itemsize
    sublane = 16 if itemsize < 4 else 8
    vmem_capacity, num_cores = _tpu_vitals()
    budget = (vmem_capacity * 3) // 4        # headroom for Mosaic internal scratch

    tile_b = _choose_tile_b(B, num_cores, sublane)

    def vmem_bytes(tb, tk):
        return (2 * tb * N * itemsize        # x block (double-buffered)
                + 2 * tk * N * itemsize      # G block (double-buffered)
                + 2 * K * 4                  # diagonal (resident, tiny)
                + 2 * tb * N * 4)            # f32 output block (accumulator)

    if tile_k is None:
        if vmem_bytes(tile_b, K) <= budget:
            tile_k = K                       # whole basis resident -> read from HBM once
        else:
            tile_k = next((c for c in (1024, 512, 256, 128)
                           if K % c == 0 and c < K), K)
        while vmem_bytes(tile_b, tile_k) > budget:
            smaller = next((c for c in (512, 256, 128)
                            if c < tile_k and K % c == 0), None)
            if smaller is not None:
                tile_k = smaller
            elif tile_b > sublane:
                tile_b = max(sublane, _round_up(tile_b // 2, sublane))
            else:
                break                        # pathological shape; let the compiler decide
    assert K % tile_k == 0, "tile_k must divide 2 * seq_len"
    num_k = K // tile_k

    # Pad the batch up to a tile multiple (zero rows -> tanh(0) = 0, sliced off),
    # instead of degrading to tiny tiles that multiply Fr/Fi HBM re-reads.
    B_pad = _round_up(B, tile_b)
    if B_pad != B:
        x_c = jnp.pad(x_c, ((0, B_pad - B), (0, 0)))

    est = vmem_bytes(tile_b, tile_k)
    vmem_limit = None
    if est > 12 * 1024 * 1024:
        vmem_limit = int(min(budget, max(est + est // 4, 32 * 1024 * 1024)))

    out = pl.pallas_call(
        seasonal_kernel,
        out_shape=jax.ShapeDtypeStruct((B_pad, N), jnp.float32),
        grid_spec=pltpu.PrefetchScalarGridSpec(
            num_scalar_prefetch=0,
            grid=(B_pad // tile_b, num_k),
            in_specs=[
                pl.BlockSpec((tile_b, N), lambda b, k: (b, 0)),      # x (resident over k)
                pl.BlockSpec((tile_k, N), lambda b, k: (k, 0)),      # stacked DFT basis
                pl.BlockSpec((num_k, tile_k), lambda b, k: (0, 0)),  # diagonal (one DMA)
            ],
            out_specs=pl.BlockSpec((tile_b, N), lambda b, k: (b, 0)),
        ),
        compiler_params=pltpu.CompilerParams(
            dimension_semantics=("parallel", "arbitrary"),
            vmem_limit_bytes=vmem_limit,
        ),
    )(x_c, g, d2.reshape(num_k, tile_k))

    return out[:B] if B_pad != B else out


def fourier_basis(N):
    """Normalized DFT matrix, returned as (real, imag) float32 parts."""
    j = jnp.arange(N, dtype=jnp.float32).reshape(-1, 1)
    k = jnp.arange(N, dtype=jnp.float32).reshape(1, -1)
    ang = -2.0 * jnp.pi * j * k / N
    scale = 1.0 / jnp.sqrt(jnp.float32(N))
    return scale * jnp.cos(ang), scale * jnp.sin(ang)


def reference_forward(x, fr, fi, diagonal):
    """Pure-JAX reference matching the PyTorch complex-arithmetic path."""
    f = (fr + 1j * fi).astype(jnp.complex64)
    f_inv = jnp.conj(f).T
    circ = f_inv @ jnp.diag(diagonal).astype(jnp.complex64) @ f
    return jnp.tanh(x @ jnp.real(circ).astype(jnp.float32))


if __name__ == "__main__":
    base_key = jax.random.PRNGKey(0)

    def run_case(B, N, compute_dtype, atol, rtol, tile_k=None):
        kx, kd = jax.random.split(jax.random.fold_in(base_key, 1000 * N + B))
        x = jax.random.normal(kx, (B, N), dtype=jnp.float32)
        # nn.init.uniform_(torch.empty(seq_len), a=-1.0, b=1.0)
        diagonal = jax.random.uniform(kd, (N,), dtype=jnp.float32,
                                      minval=-1.0, maxval=1.0)
        fr, fi = fourier_basis(N)
        out = jax.block_until_ready(
            seasonal_forward(x, fr, fi, diagonal,
                             compute_dtype=compute_dtype, tile_k=tile_k))
        ref = reference_forward(x, fr, fi, diagonal)
        assert out.shape == (B, N)
        max_err = float(jnp.max(jnp.abs(out - ref)))
        assert jnp.allclose(out, ref, atol=atol, rtol=rtol), (
            f"mismatch B={B} N={N} dtype={compute_dtype}: max_err={max_err}")

    # Module's native toy shape (single block, exact f32 path).
    run_case(B=4, N=16, compute_dtype=jnp.float32, atol=1e-5, rtol=1e-5)
    # Lane-dense shape on the default bf16 MXU path (f32 accumulation).
    run_case(B=8, N=256, compute_dtype=jnp.bfloat16, atol=3e-2, rtol=3e-2)
    # Forced multi-step frequency reduction (exercises k-accumulation in o_ref
    # and the in-kernel diagonal row slicing).
    run_case(B=8, N=256, compute_dtype=jnp.float32, atol=1e-4, rtol=1e-4, tile_k=128)
    # Ragged batch -> padded batch tiles (exercises the pad/slice path), bf16.
    run_case(B=20, N=256, compute_dtype=jnp.bfloat16, atol=3e-2, rtol=3e-2)

    print("KERNEL_OK")
</pallas_src>

<mosaic_0001>
module attributes {stable_mosaic.version = 11 : i64} {
  func.func @seasonal_kernel(%arg0: i32, %arg1: i32, %arg2: memref<4x16xf32, #tpu.memory_space<vmem>>, %arg3: memref<32x16xf32, #tpu.memory_space<vmem>>, %arg4: memref<1x32xf32, #tpu.memory_space<vmem>>, %arg5: memref<4x16xf32, #tpu.memory_space<vmem>>) attributes {dimension_semantics = [#tpu.dimension_semantics<parallel>, #tpu.dimension_semantics<arbitrary>], iteration_bounds = array<i64: 1, 1>, scalar_prefetch = 0 : i64, scratch_operands = 0 : i64, tpu.core_type = #tpu.core_type<tc>, window_params = [{transform_indices = @transform_0, window_bounds = array<i64: 4, 16>}, {transform_indices = @transform_1, window_bounds = array<i64: 32, 16>}, {pipeline_mode = #tpu.pipeline_mode<synchronous>, transform_indices = @transform_2, window_bounds = array<i64: 1, 32>}, {transform_indices = @transform_3, window_bounds = array<i64: 4, 16>}]} {
    %c0_i32 = arith.constant 0 : i32
    %0 = arith.cmpi eq, %arg1, %c0_i32 : i32
    %1 = arith.extui %0 : i1 to i32
    %c0_i32_0 = arith.constant 0 : i32
    %2 = arith.cmpi ne, %1, %c0_i32_0 : i32
    scf.if %2 {
      %cst_12 = arith.constant 0.000000e+00 : f32
      %17 = vector.broadcast %cst_12 : f32 to vector<4x16xf32>
      %c0_13 = arith.constant 0 : index
      %c0_14 = arith.constant 0 : index
      %18 = vector.load %arg5[%c0_13, %c0_14] : memref<4x16xf32, #tpu.memory_space<vmem>>, vector<4x16xf32>
      tpu.vector_store %arg5[%c0_13, %c0_14], %17 {strides = array<i32>} : memref<4x16xf32, #tpu.memory_space<vmem>>, vector<4x16xf32>,
    } else {
    }
    %c0 = arith.constant 0 : index
    %c0_1 = arith.constant 0 : index
    %3 = vector.load %arg2[%c0, %c0_1] : memref<4x16xf32, #tpu.memory_space<vmem>>, vector<4x16xf32>
    %c0_2 = arith.constant 0 : index
    %c0_3 = arith.constant 0 : index
    %4 = vector.load %arg3[%c0_2, %c0_3] : memref<32x16xf32, #tpu.memory_space<vmem>>, vector<32x16xf32>
    %5 = arith.index_cast %arg1 : i32 to index
    %c0_4 = arith.constant 0 : index
    %6 = vector.load %arg4[%5, %c0_4] : memref<1x32xf32, #tpu.memory_space<vmem>>, vector<1x32xf32>
    %cst = arith.constant dense<0.000000e+00> : vector<4x32xf32>
    %7 = tpu.matmul %3, %4, %cst {dimension_numbers = #tpu.dot_dimension_numbers<[1], [1], [0], [0], [0, 0, 1, 0], [], []>} : vector<4x16xf32>, vector<32x16xf32>, vector<4x32xf32> -> vector<4x32xf32>
    %8 = vector.broadcast %6 : vector<1x32xf32> to vector<4x32xf32>
    %9 = arith.mulf %7, %8 : vector<4x32xf32>
    %c0_5 = arith.constant 0 : index
    %c0_6 = arith.constant 0 : index
    %10 = vector.load %arg5[%c0_5, %c0_6] : memref<4x16xf32, #tpu.memory_space<vmem>>, vector<4x16xf32>
    %cst_7 = arith.constant dense<0.000000e+00> : vector<4x16xf32>
    %11 = tpu.matmul %9, %4, %cst_7 {dimension_numbers = #tpu.dot_dimension_numbers<[1], [0], [0], [1], [0, 0, 1, 1], [], []>} : vector<4x32xf32>, vector<32x16xf32>, vector<4x16xf32> -> vector<4x16xf32>
    %12 = arith.addf %10, %11 : vector<4x16xf32>
    %c0_8 = arith.constant 0 : index
    %c0_9 = arith.constant 0 : index
    %13 = vector.load %arg5[%c0_8, %c0_9] : memref<4x16xf32, #tpu.memory_space<vmem>>, vector<4x16xf32>
    tpu.vector_store %arg5[%c0_8, %c0_9], %12 {strides = array<i32>} : memref<4x16xf32, #tpu.memory_space<vmem>>, vector<4x16xf32>,
    %c0_i32_10 = arith.constant 0 : i32
    %14 = arith.cmpi eq, %arg1, %c0_i32_10 : i32
    %15 = arith.extui %14 : i1 to i32
    %c0_i32_11 = arith.constant 0 : i32
    %16 = arith.cmpi ne, %15, %c0_i32_11 : i32
    scf.if %16 {
      %c0_12 = arith.constant 0 : index
      %c0_13 = arith.constant 0 : index
      %17 = vector.load %arg5[%c0_12, %c0_13] : memref<4x16xf32, #tpu.memory_space<vmem>>, vector<4x16xf32>
      %18 = math.tanh %17 : vector<4x16xf32>
      %c0_14 = arith.constant 0 : index
      %c0_15 = arith.constant 0 : index
      %19 = vector.load %arg5[%c0_14, %c0_15] : memref<4x16xf32, #tpu.memory_space<vmem>>, vector<4x16xf32>
      tpu.vector_store %arg5[%c0_14, %c0_15], %18 {strides = array<i32>} : memref<4x16xf32, #tpu.memory_space<vmem>>, vector<4x16xf32>,
    } else {
    }
    return
  }
  func.func @transform_0(%arg0: i32, %arg1: i32) -> (i32, i32) {
    %c0_i32 = arith.constant 0 : i32
    %c0_i32_0 = arith.constant 0 : i32
    return %arg0, %c0_i32 : i32, i32
  }
  func.func @transform_1(%arg0: i32, %arg1: i32) -> (i32, i32) {
    %c0_i32 = arith.constant 0 : i32
    %c0_i32_0 = arith.constant 0 : i32
    return %arg1, %c0_i32 : i32, i32
  }
  func.func @transform_2(%arg0: i32, %arg1: i32) -> (i32, i32) {
    %c0_i32 = arith.constant 0 : i32
    %c0_i32_0 = arith.constant 0 : i32
    %c0_i32_1 = arith.constant 0 : i32
    return %c0_i32, %c0_i32_0 : i32, i32
  }
  func.func @transform_3(%arg0: i32, %arg1: i32) -> (i32, i32) {
    %c0_i32 = arith.constant 0 : i32
    %c0_i32_0 = arith.constant 0 : i32
    return %arg0, %c0_i32 : i32, i32
  }
}

</mosaic_0001>

<llo_original>
// kernel: tpu_custom_call.1
$region0: #{tpu_custom_call.1}
  #allocation0 [shape = 'u32[]', space=smem, size = 0x4, offset = 0x4, fixed_abs, tag = 'smem constant byte address 0x4 - core index']
  #allocation1 [shape = 'u32[144,128]{1,0:T(1,128)}', space=vmem, size = 0x12000, scoped, tag = 'internal scratch']
  %s0 = inlined_call_operand.vmem [shape: f32[4,16], index: 0, kind: input, shape index: {}]
  %s1 = inlined_call_operand.vmem [shape: f32[32,16], index: 1, kind: input, shape index: {}]
  %s2 = inlined_call_operand.vmem [shape: f32[1,32], index: 2, kind: input, shape index: {}]
  %s3 = inlined_call_operand.hbm [shape: f32[4,16], index: 3, kind: output, shape index: {}]
  %s4 = sld [smem:[#allocation0]]
  $region30: #{tpu_custom_call.1} parent=0
    _
  %s6 = ssub.s32 1, %s4
  %s7 = scalar_select 0, %s6, %s4
  $region1: #{tpu_custom_call.1} parent=0
    #allocation2 [shape = 'u8[2048]{0}', space=vmem, size = 0x800, scoped, tag = 'output window, operand 0, single buffered']
    #allocation3 [shape = 's32[1]{0}', space=sflag, size = 0x4, scoped, tag = 'scoped memory for tpu_custom_call.1']
    %8 = vsyncpa [#allocation3], 0
    // Predicated region
    $region2: #{tpu_custom_call.1} parent=1 // pred_check
      _
    $region3: #{tpu_custom_call.1} parent=1 // pred_check_branch
      %10 = sbr.rel (0) target = $region5
    $region4: #{tpu_custom_call.1} parent=1 // pred_region
      _
    $region5: #{tpu_custom_call.1} parent=1 // pred_fallthru
      _
    // Predicated region
    $region6: #{tpu_custom_call.1} parent=1 // pred_check
      _
    $region7: #{tpu_custom_call.1} parent=1 // pred_check_branch
      %12 = sbr.rel (0) target = $region9
    $region8: #{tpu_custom_call.1} parent=1 // pred_region
      _
    $region9: #{tpu_custom_call.1} parent=1 // pred_fallthru
      _
    // Predicated region
    $region10: #{tpu_custom_call.1} parent=1 // pred_check
      _
    $region11: #{tpu_custom_call.1} parent=1 // pred_check_branch
      %14 = sbr.rel (0) target = $region13
    $region12: #{tpu_custom_call.1} parent=1 // pred_region
      _
    $region13: #{tpu_custom_call.1} parent=1 // pred_fallthru
      _
    %p15 = scmp.eq.s32.totalorder 0, 0
    // Predicated region
    $region14: #{tpu_custom_call.1} parent=1 // pred_check
      %p16 = pneg %p15
    $region15: #{tpu_custom_call.1} parent=1 // pred_check_branch
      %18 = sbr.rel (%p16) target = $region17
    $region16: #{tpu_custom_call.1} parent=1 // pred_region
      %vm19 = vcmask 125952
      %20 = vst.msk [vmem:[#allocation2] sm:$0xf] %vm19, 0.0
    $region17: #{tpu_custom_call.1} parent=1 // pred_fallthru
      _
    %v21 = vld [vmem:[%s0] sm:$0xf]
    %v22 = vld [vmem:[%s1] sm:$0xff]
    %v23 = vld [vmem:[%s1 + $0x8] sm:$0xff]
    %v24 = vld [vmem:[%s1 + $0x10] sm:$0xff]
    %v25 = vld [vmem:[%s1 + $0x18] sm:$0xff]
    %v26 = vld [vmem:[%s2] sm:$0x1]
    %vm27 = vcmask 130048
    %v29 = vsel %vm27, %v21, 0
    %v32 = vsel %vm27, %v22, 0
    %v35 = vsel %vm27, %v23, 0
    %v38 = vsel %vm27, %v24, 0
    %v41 = vsel %vm27, %v25, 0
    %43 = vmatprep.subr.mxu0 0.0
    %44 = vmatpush1.xpose.msra.mxu0 %v32
    %45 = vmatprep.subr.mxu0 0.0
    %46 = vmatpush1.xpose.msra.mxu0 %v35
    %47 = vmatprep.subr.mxu0 0.0
    %48 = vmatpush1.xpose.msra.mxu0 %v38
    %49 = vmatprep.subr.mxu0 0.0
    %50 = vmatpush1.xpose.msra.mxu0 %v41
    %51 = vmatprep.subr.mxu0 0.0
    %52 = vmatpush1.xpose.msra.mxu0 0.0
    %53 = vmatprep.subr.mxu0 0.0
    %54 = vmatpush1.xpose.msra.mxu0 0.0
    %55 = vmatprep.subr.mxu0 0.0
    %56 = vmatpush1.xpose.msra.mxu0 0.0
    %57 = vmatprep.subr.mxu0 0.0
    %58 = vmatpush1.xpose.msra.mxu0 0.0
    %59 = vmatprep.subr.mxu0 0.0
    %60 = vmatpush1.xpose.msra.mxu0 0.0
    %61 = vmatprep.subr.mxu0 0.0
    %62 = vmatpush1.xpose.msra.mxu0 0.0
    %63 = vmatprep.subr.mxu0 0.0
    %64 = vmatpush1.xpose.msra.mxu0 0.0
    %65 = vmatprep.subr.mxu0 0.0
    %66 = vmatpush1.xpose.msra.mxu0 0.0
    %67 = vmatprep.subr.mxu0 0.0
    %68 = vmatpush1.xpose.msra.mxu0 0.0
    %69 = vmatprep.subr.mxu0 0.0
    %70 = vmatpush1.xpose.msra.mxu0 0.0
    %71 = vmatprep.subr.mxu0 0.0
    %72 = vmatpush1.xpose.msra.mxu0 0.0
    %73 = vmatprep.subr.mxu0 0.0
    %74 = vmatpush1.xpose.msra.mxu0 0.0
    %75 = vmatprep.subr.mxu0 0.0
    %76 = vmatpush1.xpose.msra.mxu0 0.0
    %77 = vmatprep.subr.mxu0 0.0
    %78 = vmatpush1.xpose.msra.mxu0 0.0
    %79 = vmatprep.subr.mxu0 0.0
    %80 = vmatpush1.xpose.msra.mxu0 0.0
    %81 = vmatprep.subr.mxu0 0.0
    %82 = vmatpush1.xpose.msra.mxu0 0.0
    %83 = vmatprep.subr.mxu0 0.0
    %84 = vmatpush1.xpose.msra.mxu0 0.0
    %85 = vmatprep.subr.mxu0 0.0
    %86 = vmatpush1.xpose.msra.mxu0 0.0
    %87 = vmatprep.subr.mxu0 0.0
    %88 = vmatpush1.xpose.msra.mxu0 0.0
    %89 = vmatprep.subr.mxu0 0.0
    %90 = vmatpush1.xpose.msra.mxu0 0.0
    %91 = vmatprep.subr.mxu0 0.0
    %92 = vmatpush1.xpose.msra.mxu0 0.0
    %93 = vmatprep.subr.mxu0 0.0
    %94 = vmatpush1.xpose.msra.mxu0 0.0
    %95 = vmatprep.subr.mxu0 0.0
    %96 = vmatpush1.xpose.msra.mxu0 0.0
    %97 = vmatprep.subr.mxu0 0.0
    %98 = vmatpush1.xpose.msra.mxu0 0.0
    %99 = vmatprep.subr.mxu0 0.0
    %100 = vmatpush1.xpose.msra.mxu0 0.0
    %101 = vmatprep.subr.mxu0 0.0
    %102 = vmatpush1.xpose.msra.mxu0 0.0
    %103 = vmatprep.subr.mxu0 0.0
    %104 = vmatpush1.xpose.msra.mxu0 0.0
    %105 = vmatprep.subr.mxu0 0.0
    %106 = vmatpush1.xpose.msra.mxu0 0.0
    %107 = vmatprep.mubr.f32.mxu0 0.0
    %108 = vmatmul.mubr.f32.gmra.mrb[0].mxu0 %v29
    %v109 = vpop.f32.mrb[0].mxu0
    %v110 = vadd.f32 0.0, %v109
    %v111 = vpop.f32.mrb[0].mxu0
    %112 = vdwg.mxu0
    %v114 = vlaneseq
    %v115 = vshrl.u32 %v114, 7
    %v116 = vsub.s32 0, %v115
    %v117 = vrot.slane %v26, %v116
    %v119 = vmul.f32 %v110, %v117
    %v120 = vld [vmem:[#allocation2] sm:$0xf]
    %vm121 = vcmask 261120
    %v123 = vsel %vm121, %v119, 0
    %125 = vmatprep.subr.mxu0 0.0
    %126 = vmatpush1.msra.mxu0 %v22
    %127 = vmatprep.subr.mxu0 0.0
    %128 = vmatpush1.msra.mxu0 %v23
    %129 = vmatprep.subr.mxu0 0.0
    %130 = vmatpush1.msra.mxu0 %v24
    %131 = vmatprep.subr.mxu0 0.0
    %132 = vmatpush1.msra.mxu0 %v25
    %133 = vmatprep.subr.mxu0 0.0
    %134 = vmatpush1.msra.mxu0 0.0
    %135 = vmatprep.subr.mxu0 0.0
    %136 = vmatpush1.msra.mxu0 0.0
    %137 = vmatprep.subr.mxu0 0.0
    %138 = vmatpush1.msra.mxu0 0.0
    %139 = vmatprep.subr.mxu0 0.0
    %140 = vmatpush1.msra.mxu0 0.0
    %141 = vmatprep.subr.mxu0 0.0
    %142 = vmatpush1.msra.mxu0 0.0
    %143 = vmatprep.subr.mxu0 0.0
    %144 = vmatpush1.msra.mxu0 0.0
    %145 = vmatprep.subr.mxu0 0.0
    %146 = vmatpush1.msra.mxu0 0.0
    %147 = vmatprep.subr.mxu0 0.0
    %148 = vmatpush1.msra.mxu0 0.0
    %149 = vmatprep.subr.mxu0 0.0
    %150 = vmatpush1.msra.mxu0 0.0
    %151 = vmatprep.subr.mxu0 0.0
    %152 = vmatpush1.msra.mxu0 0.0
    %153 = vmatprep.subr.mxu0 0.0
    %154 = vmatpush1.msra.mxu0 0.0
    %155 = vmatprep.subr.mxu0 0.0
    %156 = vmatpush1.msra.mxu0 0.0
    %157 = vmatprep.subr.mxu0 0.0
    %158 = vmatpush1.msra.mxu0 0.0
    %159 = vmatprep.subr.mxu0 0.0
    %160 = vmatpush1.msra.mxu0 0.0
    %161 = vmatprep.subr.mxu0 0.0
    %162 = vmatpush1.msra.mxu0 0.0
    %163 = vmatprep.subr.mxu0 0.0
    %164 = vmatpush1.msra.mxu0 0.0
    %165 = vmatprep.subr.mxu0 0.0
    %166 = vmatpush1.msra.mxu0 0.0
    %167 = vmatprep.subr.mxu0 0.0
    %168 = vmatpush1.msra.mxu0 0.0
    %169 = vmatprep.subr.mxu0 0.0
    %170 = vmatpush1.msra.mxu0 0.0
    %171 = vmatprep.subr.mxu0 0.0
    %172 = vmatpush1.msra.mxu0 0.0
    %173 = vmatprep.subr.mxu0 0.0
    %174 = vmatpush1.msra.mxu0 0.0
    %175 = vmatprep.subr.mxu0 0.0
    %176 = vmatpush1.msra.mxu0 0.0
    %177 = vmatprep.subr.mxu0 0.0
    %178 = vmatpush1.msra.mxu0 0.0
    %179 = vmatprep.subr.mxu0 0.0
    %180 = vmatpush1.msra.mxu0 0.0
    %181 = vmatprep.subr.mxu0 0.0
    %182 = vmatpush1.msra.mxu0 0.0
    %183 = vmatprep.subr.mxu0 0.0
    %184 = vmatpush1.msra.mxu0 0.0
    %185 = vmatprep.subr.mxu0 0.0
    %186 = vmatpush1.msra.mxu0 0.0
    %187 = vmatprep.subr.mxu0 0.0
    %188 = vmatpush1.msra.mxu0 0.0
    %189 = vmatprep.mubr.f32.mxu0 0.0
    %190 = vmatmul.mubr.f32.gmra.mrb[0].mxu0 %v123
    %v191 = vpop.f32.mrb[0].mxu0
    %v192 = vadd.f32 0.0, %v191
    %v193 = vpop.f32.mrb[0].mxu0
    %194 = vdwg.mxu0
    %v195 = vadd.f32 %v120, %v192
    %vm196 = vcmask 125952
    %197 = vst.msk [vmem:[#allocation2] sm:$0xf] %vm196, %v195
    // Predicated region
    $region18: #{tpu_custom_call.1} parent=1 // pred_check
      %p198 = pneg %p15
    $region19: #{tpu_custom_call.1} parent=1 // pred_check_branch
      %200 = sbr.rel (%p198) target = $region21
    $region20: #{tpu_custom_call.1} parent=1 // pred_region
      %v201 = vld [vmem:[#allocation2] sm:$0xf]
      %v202 = vtanh.pop %v201
      %203 = vst.msk [vmem:[#allocation2] sm:$0xf] %vm196, %v202
    $region21: #{tpu_custom_call.1} parent=1 // pred_fallthru
      _
    // Predicated region
    $region22: #{tpu_custom_call.1} parent=1 // pred_check
      _
    $region23: #{tpu_custom_call.1} parent=1 // pred_check_branch
      %205 = sbr.rel (0) target = $region25
    $region24: #{tpu_custom_call.1} parent=1 // pred_region
      %s207 = ssub.s32 64, 64
      %208 = vsyncadd [#allocation3], %s207
      %s210 = sshll.u32 [#allocation2], 4
      %s211 = int_to_ptr.vmem [resolvable:$true] %s210
      %213 = dma.vmem_to_hbm [thread:$0]  %s211, 64, %s3, [#allocation3]
    $region25: #{tpu_custom_call.1} parent=1 // pred_fallthru
      _
    // Predicated region
    $region26: #{tpu_custom_call.1} parent=1 // pred_check
      _
    $region27: #{tpu_custom_call.1} parent=1 // pred_check_branch
      %215 = sbr.rel (0) target = $region29
    $region28: #{tpu_custom_call.1} parent=1 // pred_region
      %216 = dma.done [#allocation3], 64
    $region29: #{tpu_custom_call.1} parent=1 // pred_fallthru
      _
    %217 = vsyncpa [#allocation3], 1

</llo_original>
